<compile_context>
chip_gen: v7x
topology: tpu7x:2x2x1
jax: 0.10.0
libtpu: 0.0.40
codegen_flags: <defaults>
</compile_context>

<pallas_src>
import functools
import math
import numpy as np

import jax
import jax.numpy as jnp
from jax.experimental import pallas as pl
from jax.experimental.pallas import tpu as pltpu


# ---------------------------------------------------------------------------
# 2D sincos positional embedding (same math as diffusers' get_2d_sincos_pos_embed)
# ---------------------------------------------------------------------------
def _get_1d_sincos_pos_embed_from_grid(embed_dim, pos):
    assert embed_dim % 2 == 0
    omega = np.arange(embed_dim // 2, dtype=np.float64)
    omega /= embed_dim / 2.0
    omega = 1.0 / 10000 ** omega
    pos = pos.reshape(-1)
    out = np.einsum("m,d->md", pos, omega)
    return np.concatenate([np.sin(out), np.cos(out)], axis=1)  # (M, D)


def get_2d_sincos_pos_embed(embed_dim, grid_size, base_size=16, interpolation_scale=1.0):
    if isinstance(grid_size, int):
        grid_size = (grid_size, grid_size)
    grid_h = np.arange(grid_size[0], dtype=np.float32) / (grid_size[0] / base_size) / interpolation_scale
    grid_w = np.arange(grid_size[1], dtype=np.float32) / (grid_size[1] / base_size) / interpolation_scale
    grid = np.meshgrid(grid_w, grid_h)          # w goes first (diffusers convention)
    grid = np.stack(grid, axis=0)
    grid = grid.reshape([2, 1, grid_size[1], grid_size[0]])
    assert embed_dim % 2 == 0
    emb_h = _get_1d_sincos_pos_embed_from_grid(embed_dim // 2, grid[0])
    emb_w = _get_1d_sincos_pos_embed_from_grid(embed_dim // 2, grid[1])
    return np.concatenate([emb_h, emb_w], axis=1)  # (H*W, D)


# ---------------------------------------------------------------------------
# Kernel: per (N-tile, batch-tile) grid step, for each of the BB batch rows:
#   y = x^T @ W  (+ bias, f32) [+ per-token LayerNorm] + pos_embed
#
#   x_ref  : (BB, Cpp_f, TN)   latent tile, channel-major, lane-density-folded
#   w_ref  : (Cpp_f, D_f)      flattened conv weight (block-diagonal if fold>1)
#   b_ref  : (1, D_f)          conv bias in f32 (tiny, resident)
#   pe_ref : (1, TN, D_f)      pos-embed tile (fetched once per N-tile)
#   o_ref  : (BB, TN, D_f)     lane-dense output tile (D_f % 128 == 0 when folded)
# ---------------------------------------------------------------------------
def _pos_embed_kernel(x_ref, w_ref, b_ref, pe_ref, o_ref, *,
                      layer_norm: bool, fold: int, d_orig: int, bb: int):
    w = w_ref[...]
    bias = b_ref[...].astype(jnp.float32)            # (1, D_f)
    pe = pe_ref[0].astype(jnp.float32)                # (TN, D_f)
    inv_d = 1.0 / d_orig

    for i in range(bb):                                # static unroll, bb <= 4
        x = x_ref[i]                                   # (Cpp_f, TN)
        # Transposed-LHS contraction on the MXU: (Cpp_f, TN)^T @ (Cpp_f, D_f)
        y = jax.lax.dot_general(
            x, w,
            dimension_numbers=(((0,), (0,)), ((), ())),
            preferred_element_type=jnp.float32)        # (TN, D_f) f32
        y = y + bias                                   # bias in f32, before LN

        if layer_norm:
            # One-pass statistics per original-D token segment (fold segments
            # per folded row; fold == 1 in the un-folded / D%128==0 case).
            segs = []
            for r in range(fold):
                seg = y[:, r * d_orig:(r + 1) * d_orig]
                s1 = jnp.sum(seg, axis=-1, keepdims=True)
                s2 = jnp.sum(seg * seg, axis=-1, keepdims=True)
                mean = s1 * inv_d
                var = s2 * inv_d - mean * mean
                segs.append((seg - mean) * jax.lax.rsqrt(var + 1e-6))
            y = segs[0] if fold == 1 else jnp.concatenate(segs, axis=-1)

        y = y + pe
        # NOTE: for a ragged last N-tile / batch-tile the padded rows hold
        # garbage but are never written back; LN here is strictly per-row, so
        # this is safe (do not add cross-row reductions without masking).
        o_ref[i] = y.astype(o_ref.dtype)


# ---------------------------------------------------------------------------
# Wrapper helpers
# ---------------------------------------------------------------------------
def _patchify_channel_major(x_nchw, p):
    """NCHW -> (B, C*p*p, Hp*Wp), matching Conv2d weight flattening (C, ph, pw)."""
    B, C, H, W = x_nchw.shape
    Hp, Wp = H // p, W // p
    if p == 1:
        return x_nchw.reshape(B, C, Hp * Wp)           # pure reshape, no copy
    # TODO(synk): for p>1 replace this XLA transpose with an index_map-driven
    # gather / in-kernel strided DMA to avoid the extra HBM round trip.
    x = x_nchw.reshape(B, C, Hp, p, Wp, p)
    x = jnp.transpose(x, (0, 1, 3, 5, 2, 4))           # (B, C, p, p, Hp, Wp)
    return x.reshape(B, C * p * p, Hp * Wp)


def _choose_fold(D, N):
    """Fold factor f so that f*D % 128 == 0 (lane-dense output writeback)."""
    if D % 128 == 0:
        return 1
    f = 128 // math.gcd(D, 128)
    if f <= 8 and N % f == 0:
        return f
    return 1   # fall back to lane-sparse (correct, slower) writeback


def _vmem_capacity_bytes():
    try:
        info = pltpu.get_tpu_info()
        cap = getattr(info, "vmem_capacity_bytes", None)
        if cap:
            return int(cap)
    except Exception:
        pass
    return 64 << 20   # conservative (v7x per-TC VMEM)


def _choose_tiles(N_f, D_f, Cpp_f, B, itemsize, vmem_cap):
    """Pick (BB, TN, vmem_budget) from the actual chip's VMEM capacity."""
    BB = min(B, 4)
    # ~96 MiB budget on 128-MiB parts (v5e/v6e), ~48 MiB on v7x's 64 MiB.
    budget = min(int(vmem_cap * 3 // 4), 96 << 20)
    tn_cap = 2048 if vmem_cap > (64 << 20) else 1024

    def footprint(tn):
        x_blk = 2 * BB * Cpp_f * tn * itemsize          # double-buffered x tile
        out_blk = 2 * BB * tn * D_f * itemsize          # double-buffered out tile
        pe_blk = 2 * tn * D_f * itemsize                # double-buffered pe tile
        resident = 2 * (Cpp_f * D_f * itemsize + D_f * 4)
        scratch = (BB + 1) * tn * D_f * 4               # f32 matmul / LN intermediates
        return x_blk + out_blk + pe_blk + resident + scratch

    tn = 128
    for cand in (2048, 1024, 512, 256, 128):
        if cand <= tn_cap and footprint(cand) <= budget:
            tn = cand
            break
    if N_f <= tn:
        tn = N_f          # single tile; full-extent block is always legal
    return BB, tn, budget


# ---------------------------------------------------------------------------
# Forward
# ---------------------------------------------------------------------------
def pos_embed_2d_forward(latent_nchw, conv_w, conv_b, *,
                         patch_size=1, layer_norm=False,
                         usual_height=256, usual_width=256,
                         interpolation_scale=1.0):
    """Pallas implementation of PosEmbed2D.forward (sincos, flatten=True path).

    latent_nchw : (B, C, H, W)
    conv_w      : (D, C, p, p) Conv2d weight
    conv_b      : (D,)         Conv2d bias
    returns     : (B, (H/p)*(W/p), D)
    """
    # TODO(synk): pos_embed_type='rotary' and flatten=False paths not implemented.
    B, C, H, W = latent_nchw.shape
    D = conv_w.shape[0]
    p = patch_size
    Hp, Wp = H // p, W // p
    N = Hp * Wp
    Cpp = C * p * p
    param_dtype = latent_nchw.dtype
    itemsize = np.dtype(param_dtype).itemsize

    # --- lane-density fold -----------------------------------------------------
    f = _choose_fold(D, N)
    N_f, D_f, Cpp_f = N // f, D * f, Cpp * f

    # --- inputs in channel-major (optionally folded) layout --------------------
    x = _patchify_channel_major(latent_nchw, p)                 # (B, Cpp, N)
    if f == 1:
        x_f = x                                                  # no copy for p==1
    else:
        # one-time XLA transpose on the *input* stream (D/Cpp x smaller than the
        # output stream); it buys lane-dense output writeback for D < 128.
        x_f = x.reshape(B, Cpp, N_f, f).transpose(0, 3, 1, 2).reshape(B, Cpp_f, N_f)

    w2d = conv_w.reshape(D, Cpp).T                               # (Cpp, D)
    if f == 1:
        w_f = w2d.astype(param_dtype)
    else:
        # block-diagonal weight so one matmul directly produces the folded
        # (TN, f*D) output tile (extra zero rows are free in the >=128-deep MXU).
        w_f = jnp.kron(jnp.eye(f, dtype=w2d.dtype), w2d).astype(param_dtype)

    b_f = jnp.tile(conv_b.astype(jnp.float32), f).reshape(1, D_f)   # f32 bias

    # pos-embed: grid_size from the actual input; base_size from usual_height
    # (matches the PyTorch module — usual_width only affects its recalc check,
    # never the values).
    base_size = usual_height // p
    pe_np = get_2d_sincos_pos_embed(D, (Hp, Wp), base_size=base_size,
                                    interpolation_scale=interpolation_scale)
    pe = jnp.asarray(pe_np, dtype=jnp.float32).astype(param_dtype)  # cast as module does
    pe = pe.reshape(1, N_f, D_f)

    # --- tiling -----------------------------------------------------------------
    vmem_cap = _vmem_capacity_bytes()
    BB, TN, vmem_budget = _choose_tiles(N_f, D_f, Cpp_f, B, itemsize, vmem_cap)
    num_n_tiles = pl.cdiv(N_f, TN)
    num_b_tiles = pl.cdiv(B, BB)
    # N-tiles outer, batch-tiles inner: pe tile's block index constant across the
    # inner axis -> pe read traffic is ~N*D bytes total (already minimal), so a
    # fully VMEM-resident pe buys nothing extra here.
    grid = (num_n_tiles, num_b_tiles)

    in_specs = [
        pl.BlockSpec((BB, Cpp_f, TN), lambda ni, bi: (bi, 0, ni)),   # x
        pl.BlockSpec((Cpp_f, D_f),    lambda ni, bi: (0, 0)),        # w (resident)
        pl.BlockSpec((1, D_f),        lambda ni, bi: (0, 0)),        # bias (resident)
        pl.BlockSpec((1, TN, D_f),    lambda ni, bi: (0, ni, 0)),    # pe
    ]
    out_specs = pl.BlockSpec((BB, TN, D_f), lambda ni, bi: (bi, ni, 0))

    # HBM-roofline kernel: tell XLA the dominant cost is bytes, not flops.
    cost = pl.CostEstimate(
        flops=2 * B * N * D * Cpp,
        transcendentals=(B * N) if layer_norm else 0,
        bytes_accessed=itemsize * (B * Cpp * N + Cpp * D + N * D + B * N * D),
    )

    kernel = functools.partial(_pos_embed_kernel, layer_norm=layer_norm,
                               fold=f, d_orig=D, bb=BB)
    out = pl.pallas_call(
        kernel,
        out_shape=jax.ShapeDtypeStruct((B, N_f, D_f), param_dtype),
        grid_spec=pltpu.PrefetchScalarGridSpec(
            num_scalar_prefetch=0,
            grid=grid,
            in_specs=in_specs,
            out_specs=out_specs,
        ),
        compiler_params=pltpu.CompilerParams(
            # no reduction axis -> both grid axes parallel (v7x 2-TC sharding)
            dimension_semantics=("parallel", "parallel"),
            vmem_limit_bytes=int(vmem_budget)),
        cost_estimate=cost,
    )(x_f, w_f, b_f, pe)

    # undo the lane-density fold: (B, N/f, f*D) -> (B, N, D) is a free reshape.
    return out.reshape(B, N, D)


# ---------------------------------------------------------------------------
# Self-test
# ---------------------------------------------------------------------------
if __name__ == "__main__":
    # Small, module-consistent shapes: B=2, in_channels=4, H=W=16, embed_dim=32,
    # patch_size=1, usual_height=usual_width=16 (so pos_embed matches input size).
    B, C, H, W = 2, 4, 16, 16
    D = 32
    patch_size = 1
    usual_h = usual_w = 16

    key = jax.random.PRNGKey(0)
    k_x, k_w, k_b = jax.random.split(key, 3)
    latent = jax.random.normal(k_x, (B, C, H, W), dtype=jnp.float32)
    conv_w = jax.random.normal(k_w, (D, C, patch_size, patch_size), dtype=jnp.float32) * 0.05
    conv_b = jax.random.normal(k_b, (D,), dtype=jnp.float32) * 0.01

    # Pure-JAX reference (1x1 conv == per-pixel matmul).
    Hp, Wp = H // patch_size, W // patch_size
    N = Hp * Wp
    x_flat = latent.reshape(B, C, N)
    w2d = conv_w.reshape(D, C * patch_size * patch_size)
    proj = jnp.einsum("bcn,dc->bnd", x_flat, w2d) + conv_b
    pe_ref = jnp.asarray(
        get_2d_sincos_pos_embed(D, (Hp, Wp), base_size=usual_h // patch_size),
        dtype=jnp.float32)[None]

    # layer_norm = False path.
    out = pos_embed_2d_forward(latent, conv_w, conv_b, patch_size=patch_size,
                               layer_norm=False,
                               usual_height=usual_h, usual_width=usual_w)
    out = jax.block_until_ready(out)
    assert out.shape == (B, N, D)
    ref = proj + pe_ref
    np.testing.assert_allclose(np.asarray(out), np.asarray(ref), rtol=1e-5, atol=1e-5)

    # layer_norm = True path (bias added pre-LN inside the kernel, f32).
    out_ln = pos_embed_2d_forward(latent, conv_w, conv_b, patch_size=patch_size,
                                  layer_norm=True,
                                  usual_height=usual_h, usual_width=usual_w)
    out_ln = jax.block_until_ready(out_ln)
    mu = proj.mean(-1, keepdims=True)
    var = ((proj - mu) ** 2).mean(-1, keepdims=True)
    ref_ln = (proj - mu) * jax.lax.rsqrt(var + 1e-6) + pe_ref
    np.testing.assert_allclose(np.asarray(out_ln), np.asarray(ref_ln), rtol=1e-5, atol=1e-5)

    print("KERNEL_OK")
</pallas_src>

<mosaic_0001>
module attributes {stable_mosaic.version = 11 : i64} {
  func.func @_pos_embed_kernel(%arg0: i32, %arg1: i32, %arg2: memref<2x16x64xf32, #tpu.memory_space<vmem>>, %arg3: memref<16x128xf32, #tpu.memory_space<vmem>>, %arg4: memref<1x128xf32, #tpu.memory_space<vmem>>, %arg5: memref<1x64x128xf32, #tpu.memory_space<vmem>>, %arg6: memref<2x64x128xf32, #tpu.memory_space<vmem>>) attributes {dimension_semantics = [#tpu.dimension_semantics<parallel>, #tpu.dimension_semantics<parallel>], iteration_bounds = array<i64: 1, 1>, scalar_prefetch = 0 : i64, scratch_operands = 0 : i64, tpu.core_type = #tpu.core_type<tc>, window_params = [{transform_indices = @transform_0, window_bounds = array<i64: 2, 16, 64>}, {pipeline_mode = #tpu.pipeline_mode<synchronous>, transform_indices = @transform_1, window_bounds = array<i64: 16, 128>}, {pipeline_mode = #tpu.pipeline_mode<synchronous>, transform_indices = @transform_2, window_bounds = array<i64: 1, 128>}, {transform_indices = @transform_3, window_bounds = array<i64: 1, 64, 128>}, {transform_indices = @transform_4, window_bounds = array<i64: 2, 64, 128>}]} {
    %c0 = arith.constant 0 : index
    %c0_0 = arith.constant 0 : index
    %0 = vector.load %arg3[%c0, %c0_0] : memref<16x128xf32, #tpu.memory_space<vmem>>, vector<16x128xf32>
    %c0_1 = arith.constant 0 : index
    %c0_2 = arith.constant 0 : index
    %1 = vector.load %arg4[%c0_1, %c0_2] : memref<1x128xf32, #tpu.memory_space<vmem>>, vector<1x128xf32>
    %c0_3 = arith.constant 0 : index
    %c0_4 = arith.constant 0 : index
    %c0_5 = arith.constant 0 : index
    %2 = vector.load %arg5[%c0_3, %c0_4, %c0_5] : memref<1x64x128xf32, #tpu.memory_space<vmem>>, vector<1x64x128xf32>
    %3 = vector.shape_cast %2 : vector<1x64x128xf32> to vector<64x128xf32>
    %c0_6 = arith.constant 0 : index
    %c0_7 = arith.constant 0 : index
    %c0_8 = arith.constant 0 : index
    %4 = vector.load %arg2[%c0_6, %c0_7, %c0_8] : memref<2x16x64xf32, #tpu.memory_space<vmem>>, vector<1x16x64xf32>
    %5 = vector.shape_cast %4 : vector<1x16x64xf32> to vector<16x64xf32>
    %cst = arith.constant dense<0.000000e+00> : vector<64x128xf32>
    %6 = tpu.matmul %5, %0, %cst {dimension_numbers = #tpu.dot_dimension_numbers<[0], [0], [1], [1], [0, 1, 1, 1], [], []>} : vector<16x64xf32>, vector<16x128xf32>, vector<64x128xf32> -> vector<64x128xf32>
    %7 = vector.broadcast %1 : vector<1x128xf32> to vector<64x128xf32>
    %8 = arith.addf %6, %7 : vector<64x128xf32>
    %9 = arith.addf %8, %3 : vector<64x128xf32>
    %c0_9 = arith.constant 0 : index
    %c0_10 = arith.constant 0 : index
    %c0_11 = arith.constant 0 : index
    %10 = vector.load %arg6[%c0_9, %c0_10, %c0_11] : memref<2x64x128xf32, #tpu.memory_space<vmem>>, vector<1x64x128xf32>
    %11 = vector.shape_cast %10 : vector<1x64x128xf32> to vector<64x128xf32>
    %12 = vector.shape_cast %9 : vector<64x128xf32> to vector<1x64x128xf32>
    tpu.vector_store %arg6[%c0_9, %c0_10, %c0_11], %12 {strides = array<i32>} : memref<2x64x128xf32, #tpu.memory_space<vmem>>, vector<1x64x128xf32>,
    %c1 = arith.constant 1 : index
    %c0_12 = arith.constant 0 : index
    %c0_13 = arith.constant 0 : index
    %13 = vector.load %arg2[%c1, %c0_12, %c0_13] : memref<2x16x64xf32, #tpu.memory_space<vmem>>, vector<1x16x64xf32>
    %14 = vector.shape_cast %13 : vector<1x16x64xf32> to vector<16x64xf32>
    %cst_14 = arith.constant dense<0.000000e+00> : vector<64x128xf32>
    %15 = tpu.matmul %14, %0, %cst_14 {dimension_numbers = #tpu.dot_dimension_numbers<[0], [0], [1], [1], [0, 1, 1, 1], [], []>} : vector<16x64xf32>, vector<16x128xf32>, vector<64x128xf32> -> vector<64x128xf32>
    %16 = vector.broadcast %1 : vector<1x128xf32> to vector<64x128xf32>
    %17 = arith.addf %15, %16 : vector<64x128xf32>
    %18 = arith.addf %17, %3 : vector<64x128xf32>
    %c1_15 = arith.constant 1 : index
    %c0_16 = arith.constant 0 : index
    %c0_17 = arith.constant 0 : index
    %19 = vector.load %arg6[%c1_15, %c0_16, %c0_17] : memref<2x64x128xf32, #tpu.memory_space<vmem>>, vector<1x64x128xf32>
    %20 = vector.shape_cast %19 : vector<1x64x128xf32> to vector<64x128xf32>
    %21 = vector.shape_cast %18 : vector<64x128xf32> to vector<1x64x128xf32>
    tpu.vector_store %arg6[%c1_15, %c0_16, %c0_17], %21 {strides = array<i32>} : memref<2x64x128xf32, #tpu.memory_space<vmem>>, vector<1x64x128xf32>,
    return
  }
  func.func @transform_0(%arg0: i32, %arg1: i32) -> (i32, i32, i32) {
    %c0_i32 = arith.constant 0 : i32
    %c0_i32_0 = arith.constant 0 : i32
    return %arg1, %c0_i32, %arg0 : i32, i32, i32
  }
  func.func @transform_1(%arg0: i32, %arg1: i32) -> (i32, i32) {
    %c0_i32 = arith.constant 0 : i32
    %c0_i32_0 = arith.constant 0 : i32
    %c0_i32_1 = arith.constant 0 : i32
    return %c0_i32, %c0_i32_0 : i32, i32
  }
  func.func @transform_2(%arg0: i32, %arg1: i32) -> (i32, i32) {
    %c0_i32 = arith.constant 0 : i32
    %c0_i32_0 = arith.constant 0 : i32
    %c0_i32_1 = arith.constant 0 : i32
    return %c0_i32, %c0_i32_0 : i32, i32
  }
  func.func @transform_3(%arg0: i32, %arg1: i32) -> (i32, i32, i32) {
    %c0_i32 = arith.constant 0 : i32
    %c0_i32_0 = arith.constant 0 : i32
    %c0_i32_1 = arith.constant 0 : i32
    return %c0_i32, %arg0, %c0_i32_0 : i32, i32, i32
  }
  func.func @transform_4(%arg0: i32, %arg1: i32) -> (i32, i32, i32) {
    %c0_i32 = arith.constant 0 : i32
    %c0_i32_0 = arith.constant 0 : i32
    return %arg1, %arg0, %c0_i32 : i32, i32, i32
  }
}

</mosaic_0001>

<llo_original>
// kernel: tpu_custom_call.1
$region0: #{tpu_custom_call.1}
  #allocation0 [shape = 'u32[]', space=smem, size = 0x4, offset = 0x4, fixed_abs, tag = 'smem constant byte address 0x4 - core index']
  #allocation1 [shape = 'u32[144,128]{1,0:T(1,128)}', space=vmem, size = 0x12000, scoped, tag = 'internal scratch']
  %s0 = inlined_call_operand.hbm [shape: f32[2,16,64], index: 0, kind: input, shape index: {}]
  %s1 = inlined_call_operand.hbm [shape: f32[16,128], index: 1, kind: input, shape index: {}]
  %s2 = inlined_call_operand.vmem [shape: f32[1,128], index: 2, kind: input, shape index: {}]
  %s3 = inlined_call_operand.hbm [shape: f32[1,64,128], index: 3, kind: input, shape index: {}]
  %s4 = inlined_call_operand.hbm [shape: f32[2,64,128], index: 4, kind: output, shape index: {}]
  %s5 = sld [smem:[#allocation0]]
  $region38: #{tpu_custom_call.1} parent=0
    _
  %s7 = ssub.s32 1, %s5
  %s8 = scalar_select 0, %s7, %s5
  $region1: #{tpu_custom_call.1} parent=0
    #allocation2 [shape = 'u8[16384]{0}', space=vmem, size = 0x4000, scoped, tag = 'input window, operand 0, single buffered']
    #allocation3 [shape = 's32[1]{0}', space=sflag, size = 0x4, scoped, tag = 'scoped memory for tpu_custom_call.1']
    #allocation4 [shape = 's32[1]{0}', space=sflag, size = 0x4, scoped, tag = 'scoped memory for tpu_custom_call.1']
    #allocation5 [shape = 'u8[8192]{0}', space=vmem, size = 0x2000, scoped, tag = 'input window, operand 1, single buffered']
    #allocation6 [shape = 's32[1]{0}', space=sflag, size = 0x4, scoped, tag = 'scoped memory for tpu_custom_call.1']
    #allocation7 [shape = 'u8[32768]{0}', space=vmem, size = 0x8000, scoped, tag = 'input window, operand 3, single buffered']
    #allocation8 [shape = 'u8[65536]{0}', space=vmem, size = 0x10000, scoped, tag = 'output window, operand 0, single buffered']
    %9 = vsyncpa [#allocation3], 0
    %10 = vsyncpa [#allocation6], 0
    %11 = vsyncpa [#allocation4], 0
    // Predicated region
    $region2: #{tpu_custom_call.1} parent=1 // pred_check
      _
    $region3: #{tpu_custom_call.1} parent=1 // pred_check_branch
      %13 = sbr.rel (0) target = $region5
    $region4: #{tpu_custom_call.1} parent=1 // pred_region
      %s15 = ssub.s32 512, 512
      %16 = vsyncadd [#allocation3], %s15
      %s17 = sshll.u32 [#allocation2], 4
      %s18 = int_to_ptr.vmem [resolvable:$true] %s17
      %23 = dma.hbm_to_vmem [thread:$0]  %s0, 512, %s18, [#allocation3], 128, 128, 8
    $region5: #{tpu_custom_call.1} parent=1 // pred_fallthru
      _
    // Predicated region
    $region6: #{tpu_custom_call.1} parent=1 // pred_check
      _
    $region7: #{tpu_custom_call.1} parent=1 // pred_check_branch
      %25 = sbr.rel (0) target = $region9
    $region8: #{tpu_custom_call.1} parent=1 // pred_region
      %s27 = ssub.s32 256, 256
      %28 = vsyncadd [#allocation6], %s27
      %s29 = sshll.u32 [#allocation5], 4
      %s30 = int_to_ptr.vmem [resolvable:$true] %s29
      %35 = dma.hbm_to_vmem [thread:$0]  %s1, 256, %s30, [#allocation6], 128, 128, 8
    $region9: #{tpu_custom_call.1} parent=1 // pred_fallthru
      _
    // Predicated region
    $region10: #{tpu_custom_call.1} parent=1 // pred_check
      _
    $region11: #{tpu_custom_call.1} parent=1 // pred_check_branch
      %37 = sbr.rel (0) target = $region13
    $region12: #{tpu_custom_call.1} parent=1 // pred_region
      _
    $region13: #{tpu_custom_call.1} parent=1 // pred_fallthru
      _
    // Predicated region
    $region14: #{tpu_custom_call.1} parent=1 // pred_check
      _
    $region15: #{tpu_custom_call.1} parent=1 // pred_check_branch
      %39 = sbr.rel (0) target = $region17
    $region16: #{tpu_custom_call.1} parent=1 // pred_region
      %s41 = ssub.s32 1024, 1024
      %42 = vsyncadd [#allocation6], %s41
      %s43 = sshll.u32 [#allocation7], 4
      %s44 = int_to_ptr.vmem [resolvable:$true] %s43
      %49 = dma.hbm_to_vmem [thread:$0]  %s3, 1024, %s44, [#allocation6], 128, 128, 8
    $region17: #{tpu_custom_call.1} parent=1 // pred_fallthru
      _
    // Predicated region
    $region18: #{tpu_custom_call.1} parent=1 // pred_check
      _
    $region19: #{tpu_custom_call.1} parent=1 // pred_check_branch
      %51 = sbr.rel (0) target = $region21
    $region20: #{tpu_custom_call.1} parent=1 // pred_region
      %52 = dma.done [#allocation3], 512
    $region21: #{tpu_custom_call.1} parent=1 // pred_fallthru
      _
    // Predicated region
    $region22: #{tpu_custom_call.1} parent=1 // pred_check
      _
    $region23: #{tpu_custom_call.1} parent=1 // pred_check_branch
      %54 = sbr.rel (0) target = $region25
    $region24: #{tpu_custom_call.1} parent=1 // pred_region
      %55 = dma.done [#allocation6], 256
    $region25: #{tpu_custom_call.1} parent=1 // pred_fallthru
      _
    // Predicated region
    $region26: #{tpu_custom_call.1} parent=1 // pred_check
      _
    $region27: #{tpu_custom_call.1} parent=1 // pred_check_branch
      %57 = sbr.rel (0) target = $region29
    $region28: #{tpu_custom_call.1} parent=1 // pred_region
      %58 = dma.done [#allocation6], 1024
    $region29: #{tpu_custom_call.1} parent=1 // pred_fallthru
      _
    %v59 = vld [vmem:[#allocation5] sm:$0xff]
    %v60 = vld [vmem:[#allocation5 + $0x8] sm:$0xff]
    %v61 = vld [vmem:[%s2] sm:$0x1]
    %v62 = vld [vmem:[#allocation7] sm:$0xff]
    %v63 = vld [vmem:[#allocation7 + $0x8] sm:$0xff]
    %v64 = vld [vmem:[#allocation7 + $0x10] sm:$0xff]
    %v65 = vld [vmem:[#allocation7 + $0x18] sm:$0xff]
    %v66 = vld [vmem:[#allocation7 + $0x20] sm:$0xff]
    %v67 = vld [vmem:[#allocation7 + $0x28] sm:$0xff]
    %v68 = vld [vmem:[#allocation7 + $0x30] sm:$0xff]
    %v69 = vld [vmem:[#allocation7 + $0x38] sm:$0xff]
    %v70 = vld [vmem:[#allocation2] sm:$0xff]
    %v71 = vld [vmem:[#allocation2 + $0x8] sm:$0xff]
    %v73 = vlaneseq
    %v74 = vshrl.u32 %v73, 7
    %v75 = vsub.s32 0, %v74
    %v76 = vrot.slane %v61, %v75
    %78 = vxpose.xlu0.b32.start [1/16] %v70, 128
    %79 = vxpose.xlu0.b32.cont [2/16] %v71, 128
    %80 = vxpose.xlu0.b32.cont [3/16] 0.0, 128
    %81 = vxpose.xlu0.b32.cont [4/16] 0.0, 128
    %82 = vxpose.xlu0.b32.cont [5/16] 0.0, 128
    %83 = vxpose.xlu0.b32.cont [6/16] 0.0, 128
    %84 = vxpose.xlu0.b32.cont [7/16] 0.0, 128
    %85 = vxpose.xlu0.b32.cont [8/16] 0.0, 128
    %86 = vxpose.xlu0.b32.cont [9/16] 0.0, 128
    %87 = vxpose.xlu0.b32.cont [10/16] 0.0, 128
    %88 = vxpose.xlu0.b32.cont [11/16] 0.0, 128
    %89 = vxpose.xlu0.b32.cont [12/16] 0.0, 128
    %90 = vxpose.xlu0.b32.cont [13/16] 0.0, 128
    %91 = vxpose.xlu0.b32.cont [14/16] 0.0, 128
    %92 = vxpose.xlu0.b32.cont [15/16] 0.0, 128
    %93 = vxpose.xlu0.b32.end [16/16] 0.0, 128
    %v94 = vpop.trf.xlu0
    %v95 = vpop.trf.xlu0
    %v96 = vpop.trf.xlu0
    %v97 = vpop.trf.xlu0
    %v98 = vpop.trf.xlu0
    %v99 = vpop.trf.xlu0
    %v100 = vpop.trf.xlu0
    %v101 = vpop.trf.xlu0
    %v102 = vpop.trf.xlu0
    %v103 = vpop.trf.xlu0
    %v104 = vpop.trf.xlu0
    %v105 = vpop.trf.xlu0
    %v106 = vpop.trf.xlu0
    %v107 = vpop.trf.xlu0
    %v108 = vpop.trf.xlu0
    %v109 = vpop.trf.xlu0
    %vm110 = vcmask 130048
    %v112 = vsel %vm110, %v94, 0
    %v115 = vsel %vm110, %v95, 0
    %v118 = vsel %vm110, %v96, 0
    %v121 = vsel %vm110, %v97, 0
    %v124 = vsel %vm110, %v98, 0
    %v127 = vsel %vm110, %v99, 0
    %v130 = vsel %vm110, %v100, 0
    %v133 = vsel %vm110, %v101, 0
    %135 = vmatprep.subr.mxu0 0.0
    %136 = vmatpush1.msra.mxu0 %v59
    %137 = vmatprep.subr.mxu0 0.0
    %138 = vmatpush1.msra.mxu0 %v60
    %139 = vmatprep.subr.mxu0 0.0
    %140 = vmatpush1.msra.mxu0 0.0
    %141 = vmatprep.subr.mxu0 0.0
    %142 = vmatpush1.msra.mxu0 0.0
    %143 = vmatprep.subr.mxu0 0.0
    %144 = vmatpush1.msra.mxu0 0.0
    %145 = vmatprep.subr.mxu0 0.0
    %146 = vmatpush1.msra.mxu0 0.0
    %147 = vmatprep.subr.mxu0 0.0
    %148 = vmatpush1.msra.mxu0 0.0
    %149 = vmatprep.subr.mxu0 0.0
    %150 = vmatpush1.msra.mxu0 0.0
    %151 = vmatprep.subr.mxu0 0.0
    %152 = vmatpush1.msra.mxu0 0.0
    %153 = vmatprep.subr.mxu0 0.0
    %154 = vmatpush1.msra.mxu0 0.0
    %155 = vmatprep.subr.mxu0 0.0
    %156 = vmatpush1.msra.mxu0 0.0
    %157 = vmatprep.subr.mxu0 0.0
    %158 = vmatpush1.msra.mxu0 0.0
    %159 = vmatprep.subr.mxu0 0.0
    %160 = vmatpush1.msra.mxu0 0.0
    %161 = vmatprep.subr.mxu0 0.0
    %162 = vmatpush1.msra.mxu0 0.0
    %163 = vmatprep.subr.mxu0 0.0
    %164 = vmatpush1.msra.mxu0 0.0
    %165 = vmatprep.subr.mxu0 0.0
    %166 = vmatpush1.msra.mxu0 0.0
    %167 = vmatprep.subr.mxu0 0.0
    %168 = vmatpush1.msra.mxu0 0.0
    %169 = vmatprep.subr.mxu0 0.0
    %170 = vmatpush1.msra.mxu0 0.0
    %171 = vmatprep.subr.mxu0 0.0
    %172 = vmatpush1.msra.mxu0 0.0
    %173 = vmatprep.subr.mxu0 0.0
    %174 = vmatpush1.msra.mxu0 0.0
    %175 = vmatprep.subr.mxu0 0.0
    %176 = vmatpush1.msra.mxu0 0.0
    %177 = vmatprep.subr.mxu0 0.0
    %178 = vmatpush1.msra.mxu0 0.0
    %179 = vmatprep.subr.mxu0 0.0
    %180 = vmatpush1.msra.mxu0 0.0
    %181 = vmatprep.subr.mxu0 0.0
    %182 = vmatpush1.msra.mxu0 0.0
    %183 = vmatprep.subr.mxu0 0.0
    %184 = vmatpush1.msra.mxu0 0.0
    %185 = vmatprep.subr.mxu0 0.0
    %186 = vmatpush1.msra.mxu0 0.0
    %187 = vmatprep.subr.mxu0 0.0
    %188 = vmatpush1.msra.mxu0 0.0
    %189 = vmatprep.subr.mxu0 0.0
    %190 = vmatpush1.msra.mxu0 0.0
    %191 = vmatprep.subr.mxu0 0.0
    %192 = vmatpush1.msra.mxu0 0.0
    %193 = vmatprep.subr.mxu0 0.0
    %194 = vmatpush1.msra.mxu0 0.0
    %195 = vmatprep.subr.mxu0 0.0
    %196 = vmatpush1.msra.mxu0 0.0
    %197 = vmatprep.subr.mxu0 0.0
    %198 = vmatpush1.msra.mxu0 0.0
    %199 = vmatprep.mubr.f32.mxu0 0.0
    %200 = vmatmul.mubr.f32.gmra.mrb[0].mxu0 %v112
    %v201 = vpop.f32.mrb[0].mxu0
    %v202 = vadd.f32 %v76, %v201
    %v203 = vpop.f32.mrb[0].mxu0
    %204 = vmatprep.mubr.f32.mxu0 0.0
    %205 = vmatmul.mubr.f32.gmra.mrb[0].mxu0 %v115
    %v206 = vpop.f32.mrb[0].mxu0
    %v207 = vadd.f32 %v76, %v206
    %v208 = vpop.f32.mrb[0].mxu0
    %209 = vmatprep.mubr.f32.mxu0 0.0
    %210 = vmatmul.mubr.f32.gmra.mrb[0].mxu0 %v118
    %v211 = vpop.f32.mrb[0].mxu0
    %v212 = vadd.f32 %v76, %v211
    %v213 = vpop.f32.mrb[0].mxu0
    %214 = vmatprep.mubr.f32.mxu0 0.0
    %215 = vmatmul.mubr.f32.gmra.mrb[0].mxu0 %v121
    %v216 = vpop.f32.mrb[0].mxu0
    %v217 = vadd.f32 %v76, %v216
    %v218 = vpop.f32.mrb[0].mxu0
    %219 = vmatprep.mubr.f32.mxu0 0.0
    %220 = vmatmul.mubr.f32.gmra.mrb[0].mxu0 %v124
    %v221 = vpop.f32.mrb[0].mxu0
    %v222 = vadd.f32 %v76, %v221
    %v223 = vpop.f32.mrb[0].mxu0
    %224 = vmatprep.mubr.f32.mxu0 0.0
    %225 = vmatmul.mubr.f32.gmra.mrb[0].mxu0 %v127
    %v226 = vpop.f32.mrb[0].mxu0
    %v227 = vadd.f32 %v76, %v226
    %v228 = vpop.f32.mrb[0].mxu0
    %229 = vmatprep.mubr.f32.mxu0 0.0
    %230 = vmatmul.mubr.f32.gmra.mrb[0].mxu0 %v130
    %v231 = vpop.f32.mrb[0].mxu0
    %v232 = vadd.f32 %v76, %v231
    %v233 = vpop.f32.mrb[0].mxu0
    %234 = vmatprep.mubr.f32.mxu0 0.0
    %235 = vmatmul.mubr.f32.gmra.mrb[0].mxu0 %v133
    %v236 = vpop.f32.mrb[0].mxu0
    %v237 = vadd.f32 %v76, %v236
    %v238 = vpop.f32.mrb[0].mxu0
    %239 = vdwg.mxu0
    %v240 = vadd.f32 %v202, %v62
    %v241 = vadd.f32 %v207, %v63
    %v242 = vadd.f32 %v212, %v64
    %v243 = vadd.f32 %v217, %v65
    %v244 = vadd.f32 %v222, %v66
    %v245 = vadd.f32 %v227, %v67
    %v246 = vadd.f32 %v232, %v68
    %v247 = vadd.f32 %v237, %v69
    %248 = vst [vmem:[#allocation8] sm:$0xff] %v240
    %249 = vst [vmem:[#allocation8 + $0x8] sm:$0xff] %v241
    %250 = vst [vmem:[#allocation8 + $0x10] sm:$0xff] %v242
    %251 = vst [vmem:[#allocation8 + $0x18] sm:$0xff] %v243
    %252 = vst [vmem:[#allocation8 + $0x20] sm:$0xff] %v244
    %253 = vst [vmem:[#allocation8 + $0x28] sm:$0xff] %v245
    %254 = vst [vmem:[#allocation8 + $0x30] sm:$0xff] %v246
    %255 = vst [vmem:[#allocation8 + $0x38] sm:$0xff] %v247
    %s256 = scalar_lea.vmem [#allocation2], 16
    %v257 = vld [vmem:[%s256] sm:$0xff]
    %v258 = vld [vmem:[%s256 + $0x8] sm:$0xff]
    %259 = vxpose.xlu0.b32.start [1/16] %v257, 128
    %260 = vxpose.xlu0.b32.cont [2/16] %v258, 128
    %261 = vxpose.xlu0.b32.cont [3/16] 0.0, 128
    %262 = vxpose.xlu0.b32.cont [4/16] 0.0, 128
    %263 = vxpose.xlu0.b32.cont [5/16] 0.0, 128
    %264 = vxpose.xlu0.b32.cont [6/16] 0.0, 128
    %265 = vxpose.xlu0.b32.cont [7/16] 0.0, 128
    %266 = vxpose.xlu0.b32.cont [8/16] 0.0, 128
    %267 = vxpose.xlu0.b32.cont [9/16] 0.0, 128
    %268 = vxpose.xlu0.b32.cont [10/16] 0.0, 128
    %269 = vxpose.xlu0.b32.cont [11/16] 0.0, 128
    %270 = vxpose.xlu0.b32.cont [12/16] 0.0, 128
    %271 = vxpose.xlu0.b32.cont [13/16] 0.0, 128
    %272 = vxpose.xlu0.b32.cont [14/16] 0.0, 128
    %273 = vxpose.xlu0.b32.cont [15/16] 0.0, 128
    %274 = vxpose.xlu0.b32.end [16/16] 0.0, 128
    %v275 = vpop.trf.xlu0
    %v276 = vpop.trf.xlu0
    %v277 = vpop.trf.xlu0
    %v278 = vpop.trf.xlu0
    %v279 = vpop.trf.xlu0
    %v280 = vpop.trf.xlu0
    %v281 = vpop.trf.xlu0
    %v282 = vpop.trf.xlu0
    %v283 = vpop.trf.xlu0
    %v284 = vpop.trf.xlu0
    %v285 = vpop.trf.xlu0
    %v286 = vpop.trf.xlu0
    %v287 = vpop.trf.xlu0
    %v288 = vpop.trf.xlu0
    %v289 = vpop.trf.xlu0
    %v290 = vpop.trf.xlu0
    %v292 = vsel %vm110, %v275, 0
    %v295 = vsel %vm110, %v276, 0
    %v298 = vsel %vm110, %v277, 0
    %v301 = vsel %vm110, %v278, 0
    %v304 = vsel %vm110, %v279, 0
    %v307 = vsel %vm110, %v280, 0
    %v310 = vsel %vm110, %v281, 0
    %v313 = vsel %vm110, %v282, 0
    %315 = vmatprep.subr.mxu0 0.0
    %316 = vmatpush1.msra.mxu0 %v59
    %317 = vmatprep.subr.mxu0 0.0
    %318 = vmatpush1.msra.mxu0 %v60
    %319 = vmatprep.subr.mxu0 0.0
    %320 = vmatpush1.msra.mxu0 0.0
    %321 = vmatprep.subr.mxu0 0.0
    %322 = vmatpush1.msra.mxu0 0.0
    %323 = vmatprep.subr.mxu0 0.0
    %324 = vmatpush1.msra.mxu0 0.0
    %325 = vmatprep.subr.mxu0 0.0
    %326 = vmatpush1.msra.mxu0 0.0
    %327 = vmatprep.subr.mxu0 0.0
    %328 = vmatpush1.msra.mxu0 0.0
    %329 = vmatprep.subr.mxu0 0.0
    %330 = vmatpush1.msra.mxu0 0.0
    %331 = vmatprep.subr.mxu0 0.0
    %332 = vmatpush1.msra.mxu0 0.0
    %333 = vmatprep.subr.mxu0 0.0
    %334 = vmatpush1.msra.mxu0 0.0
    %335 = vmatprep.subr.mxu0 0.0
    %336 = vmatpush1.msra.mxu0 0.0
    %337 = vmatprep.subr.mxu0 0.0
    %338 = vmatpush1.msra.mxu0 0.0
    %339 = vmatprep.subr.mxu0 0.0
    %340 = vmatpush1.msra.mxu0 0.0
    %341 = vmatprep.subr.mxu0 0.0
    %342 = vmatpush1.msra.mxu0 0.0
    %343 = vmatprep.subr.mxu0 0.0
    %344 = vmatpush1.msra.mxu0 0.0
    %345 = vmatprep.subr.mxu0 0.0
    %346 = vmatpush1.msra.mxu0 0.0
    %347 = vmatprep.subr.mxu0 0.0
    %348 = vmatpush1.msra.mxu0 0.0
    %349 = vmatprep.subr.mxu0 0.0
    %350 = vmatpush1.msra.mxu0 0.0
    %351 = vmatprep.subr.mxu0 0.0
    %352 = vmatpush1.msra.mxu0 0.0
    %353 = vmatprep.subr.mxu0 0.0
    %354 = vmatpush1.msra.mxu0 0.0
    %355 = vmatprep.subr.mxu0 0.0
    %356 = vmatpush1.msra.mxu0 0.0
    %357 = vmatprep.subr.mxu0 0.0
    %358 = vmatpush1.msra.mxu0 0.0
    %359 = vmatprep.subr.mxu0 0.0
    %360 = vmatpush1.msra.mxu0 0.0
    %361 = vmatprep.subr.mxu0 0.0
    %362 = vmatpush1.msra.mxu0 0.0
    %363 = vmatprep.subr.mxu0 0.0
    %364 = vmatpush1.msra.mxu0 0.0
    %365 = vmatprep.subr.mxu0 0.0
    %366 = vmatpush1.msra.mxu0 0.0
    %367 = vmatprep.subr.mxu0 0.0
    %368 = vmatpush1.msra.mxu0 0.0
    %369 = vmatprep.subr.mxu0 0.0
    %370 = vmatpush1.msra.mxu0 0.0
    %371 = vmatprep.subr.mxu0 0.0
    %372 = vmatpush1.msra.mxu0 0.0
    %373 = vmatprep.subr.mxu0 0.0
    %374 = vmatpush1.msra.mxu0 0.0
    %375 = vmatprep.subr.mxu0 0.0
    %376 = vmatpush1.msra.mxu0 0.0
    %377 = vmatprep.subr.mxu0 0.0
    %378 = vmatpush1.msra.mxu0 0.0
    %379 = vmatprep.mubr.f32.mxu0 0.0
    %380 = vmatmul.mubr.f32.gmra.mrb[0].mxu0 %v292
    %v381 = vpop.f32.mrb[0].mxu0
    %v382 = vadd.f32 %v76, %v381
    %v383 = vpop.f32.mrb[0].mxu0
    %384 = vmatprep.mubr.f32.mxu0 0.0
    %385 = vmatmul.mubr.f32.gmra.mrb[0].mxu0 %v295
    %v386 = vpop.f32.mrb[0].mxu0
    %v387 = vadd.f32 %v76, %v386
    %v388 = vpop.f32.mrb[0].mxu0
    %389 = vmatprep.mubr.f32.mxu0 0.0
    %390 = vmatmul.mubr.f32.gmra.mrb[0].mxu0 %v298
    %v391 = vpop.f32.mrb[0].mxu0
    %v392 = vadd.f32 %v76, %v391
    %v393 = vpop.f32.mrb[0].mxu0
    %394 = vmatprep.mubr.f32.mxu0 0.0
    %395 = vmatmul.mubr.f32.gmra.mrb[0].mxu0 %v301
    %v396 = vpop.f32.mrb[0].mxu0
    %v397 = vadd.f32 %v76, %v396
    %v398 = vpop.f32.mrb[0].mxu0
    %399 = vmatprep.mubr.f32.mxu0 0.0
    %400 = vmatmul.mubr.f32.gmra.mrb[0].mxu0 %v304
    %v401 = vpop.f32.mrb[0].mxu0
    %v402 = vadd.f32 %v76, %v401
    %v403 = vpop.f32.mrb[0].mxu0
    %404 = vmatprep.mubr.f32.mxu0 0.0
    %405 = vmatmul.mubr.f32.gmra.mrb[0].mxu0 %v307
    %v406 = vpop.f32.mrb[0].mxu0
    %v407 = vadd.f32 %v76, %v406
    %v408 = vpop.f32.mrb[0].mxu0
    %409 = vmatprep.mubr.f32.mxu0 0.0
    %410 = vmatmul.mubr.f32.gmra.mrb[0].mxu0 %v310
    %v411 = vpop.f32.mrb[0].mxu0
    %v412 = vadd.f32 %v76, %v411
    %v413 = vpop.f32.mrb[0].mxu0
    %414 = vmatprep.mubr.f32.mxu0 0.0
    %415 = vmatmul.mubr.f32.gmra.mrb[0].mxu0 %v313
    %v416 = vpop.f32.mrb[0].mxu0
    %v417 = vadd.f32 %v76, %v416
    %v418 = vpop.f32.mrb[0].mxu0
    %419 = vdwg.mxu0
    %v420 = vadd.f32 %v382, %v62
    %v421 = vadd.f32 %v387, %v63
    %v422 = vadd.f32 %v392, %v64
    %v423 = vadd.f32 %v397, %v65
    %v424 = vadd.f32 %v402, %v66
    %v425 = vadd.f32 %v407, %v67
    %v426 = vadd.f32 %v412, %v68
    %v427 = vadd.f32 %v417, %v69
    %s428 = scalar_lea.vmem [#allocation8], 64
    %429 = vst [vmem:[%s428] sm:$0xff] %v420
    %430 = vst [vmem:[%s428 + $0x8] sm:$0xff] %v421
    %431 = vst [vmem:[%s428 + $0x10] sm:$0xff] %v422
    %432 = vst [vmem:[%s428 + $0x18] sm:$0xff] %v423
    %433 = vst [vmem:[%s428 + $0x20] sm:$0xff] %v424
    %434 = vst [vmem:[%s428 + $0x28] sm:$0xff] %v425
    %435 = vst [vmem:[%s428 + $0x30] sm:$0xff] %v426
    %436 = vst [vmem:[%s428 + $0x38] sm:$0xff] %v427
    // Predicated region
    $region30: #{tpu_custom_call.1} parent=1 // pred_check
      _
    $region31: #{tpu_custom_call.1} parent=1 // pred_check_branch
      %438 = sbr.rel (0) target = $region33
    $region32: #{tpu_custom_call.1} parent=1 // pred_region
      %s440 = ssub.s32 2048, 2048
      %441 = vsyncadd [#allocation4], %s440
      %s442 = sshll.u32 [#allocation8], 4
      %s443 = int_to_ptr.vmem [resolvable:$true] %s442
      %448 = dma.vmem_to_hbm [thread:$0]  %s443, 2048, %s4, [#allocation4], 128, 128, 8
    $region33: #{tpu_custom_call.1} parent=1 // pred_fallthru
      _
    // Predicated region
    $region34: #{tpu_custom_call.1} parent=1 // pred_check
      _
    $region35: #{tpu_custom_call.1} parent=1 // pred_check_branch
      %450 = sbr.rel (0) target = $region37
    $region36: #{tpu_custom_call.1} parent=1 // pred_region
      %451 = dma.done [#allocation4], 2048
    $region37: #{tpu_custom_call.1} parent=1 // pred_fallthru
      _
    %452 = vsyncpa [#allocation3], 1
    %453 = vsyncpa [#allocation6], 1
    %454 = vsyncpa [#allocation4], 1

</llo_original>
